<compile_context>
chip_gen: v7x
topology: tpu7x:2x2x1
jax: 0.10.0
libtpu: 0.0.40
codegen_flags: <defaults>
</compile_context>

<pallas_src>
import math
from functools import partial

import jax
import jax.numpy as jnp
from jax.experimental import pallas as pl
from jax.experimental.pallas import tpu as pltpu


def _round_up(x, m):
    return (x + m - 1) // m * m


def _base_encoder_kernel(const_ref, eps_ref, loc_ref, scale_ref, z_ref, logp_ref,
                         *, pack, dim):
    """One row-tile of reparameterized sampling + diag-Gaussian log prob.

    const_ref: SMEM (1,)            -0.5*D*log(2pi) - sum(log_scale)   (loop invariant)
    eps_ref:   VMEM (TM, pack*dim)  standard-normal noise, `pack` samples per row
    loc_ref:   VMEM (1,  pack*dim)  mean, tiled `pack` times along lanes
    scale_ref: VMEM (1,  pack*dim)  exp(log_scale), tiled `pack` times along lanes
    z_ref:     VMEM (TM, pack*dim)  output samples
    logp_ref:  VMEM (TM, pack)      output log q per packed sample
    """
    eps = eps_ref[...]                                   # (TM, pack*dim)
    # Reparameterization: one mul + add per element (VPU), fully lane-dense.
    z_ref[...] = loc_ref[...] + scale_ref[...] * eps

    # Segmented quadratic term: 0.5 * sum_d eps^2 for each of the `pack` samples
    # packed along the lane axis. Built only from lane slices, row reduces,
    # iota + where (all bulletproof Mosaic lowerings; no transpose/reshape).
    e2 = eps * eps
    tm_rows = eps.shape[0]
    col = jax.lax.broadcasted_iota(jnp.int32, (tm_rows, pack), 1)
    quad = jnp.zeros((tm_rows, pack), jnp.float32)
    for p in range(pack):                                # pack is small & static
        s_p = jnp.sum(e2[:, p * dim:(p + 1) * dim], axis=1, keepdims=True)  # (TM,1)
        quad = quad + jnp.where(col == p, s_p, jnp.float32(0.0))

    logp_ref[...] = const_ref[0] - 0.5 * quad


def base_encoder_forward(x, loc, log_scale, eps, num_samples, *, max_rows_per_tile=2048):
    """Pallas-backed forward of a ConstDiagGaussian BaseEncoder.

    x:   (B, C, H, W)  conditioning variable (only the batch size is used)
    loc, log_scale: (1, 1, D) parameters
    eps: (B, num_samples, D) pre-drawn standard normal noise
    Returns z of shape (B, num_samples, D) and log_p of shape (B, num_samples).
    """
    B = x.shape[0]
    D = loc.shape[-1]
    S = num_samples
    BS = B * S
    assert eps.shape == (B, S, D)

    # ---- Hoisted, loop-invariant parameter work (runs once, not per grid step).
    loc_f = loc.reshape(1, D).astype(jnp.float32)
    ls_f = log_scale.reshape(1, D).astype(jnp.float32)
    scale_f = jnp.exp(ls_f)
    logp_const = (jnp.float32(-0.5 * D * math.log(2.0 * math.pi))
                  - jnp.sum(ls_f)).reshape(1).astype(jnp.float32)

    # ---- Lane packing: put `pack` samples in each 128-wide lane row when D is narrow.
    if D < 128 and 128 % D == 0 and BS % (128 // D) == 0:
        pack = 128 // D
    else:
        pack = 1
    DP = pack * D
    rows = BS // pack

    eps2d = eps.reshape(rows, DP).astype(jnp.float32)    # metadata-only reshape
    loc_p = jnp.tile(loc_f, (1, pack))                   # (1, DP)
    scale_p = jnp.tile(scale_f, (1, pack))               # (1, DP)

    # ---- Row tiling: multiple of 8 sublanes; 2048 rows x 128 lanes f32 = 1 MiB per
    # buffer, so double-buffered eps + z + logp stays ~4-5 MiB — well under the
    # default scoped-VMEM limit on v5e (16 MiB), v6e (32 MiB) and v7x (32 MiB).
    tm = min(max_rows_per_tile, _round_up(rows, 8))
    rows_pad = _round_up(rows, tm)
    if rows_pad != rows:
        eps2d = jnp.concatenate(
            [eps2d, jnp.zeros((rows_pad - rows, DP), jnp.float32)], axis=0)

    grid = (rows_pad // tm,)

    kernel = partial(_base_encoder_kernel, pack=pack, dim=D)

    # Advisory cost: mem-bound elementwise + small reduce.
    bytes_accessed = int(2 * rows_pad * DP * 4 + rows_pad * pack * 4 + 2 * DP * 4)
    cost = pl.CostEstimate(flops=int(5 * rows_pad * DP),
                           transcendentals=0,
                           bytes_accessed=bytes_accessed)

    z_pad, logp_pad = pl.pallas_call(
        kernel,
        grid=grid,
        in_specs=[
            pl.BlockSpec(memory_space=pltpu.MemorySpace.SMEM),       # logp constant
            pl.BlockSpec((tm, DP), lambda i: (i, 0)),                # eps tile
            pl.BlockSpec((1, DP), lambda i: (0, 0)),                 # loc (resident)
            pl.BlockSpec((1, DP), lambda i: (0, 0)),                 # scale (resident)
        ],
        out_specs=(
            pl.BlockSpec((tm, DP), lambda i: (i, 0)),                # z tile
            pl.BlockSpec((tm, pack), lambda i: (i, 0)),              # log_p tile
        ),
        out_shape=(
            jax.ShapeDtypeStruct((rows_pad, DP), jnp.float32),
            jax.ShapeDtypeStruct((rows_pad, pack), jnp.float32),
        ),
        compiler_params=pltpu.CompilerParams(
            dimension_semantics=("parallel",),   # data-parallel rows -> megacore on v7x
        ),
        cost_estimate=cost,
    )(logp_const, eps2d, loc_p, scale_p)

    z = z_pad[:rows].reshape(B, S, D)
    log_p = logp_pad[:rows].reshape(B, S)
    return z, log_p


def _reference_forward(loc, log_scale, eps):
    """Pure-JAX reference for correctness checking."""
    B, S, D = eps.shape
    scale = jnp.exp(log_scale)
    z = loc + scale * eps
    log_p = (-0.5 * D * math.log(2.0 * math.pi)
             - jnp.sum(log_scale + 0.5 * eps * eps, axis=2))
    return z, log_p


if __name__ == "__main__":
    key = jax.random.PRNGKey(0)
    k_x, k_loc, k_ls, k_eps = jax.random.split(key, 4)

    B, C, H, W = 2, 4, 16, 16      # conditioning variable (NCHW)
    D = 32                         # latent dimension
    num_samples = 4

    x = jax.random.normal(k_x, (B, C, H, W), dtype=jnp.float32)
    loc = 0.1 * jax.random.normal(k_loc, (1, 1, D), dtype=jnp.float32)
    log_scale = 0.05 * jax.random.normal(k_ls, (1, 1, D), dtype=jnp.float32)
    eps = jax.random.normal(k_eps, (B, num_samples, D), dtype=jnp.float32)

    z, log_p = base_encoder_forward(x, loc, log_scale, eps, num_samples)
    jax.block_until_ready((z, log_p))

    z_ref, log_p_ref = _reference_forward(loc, log_scale, eps)
    assert z.shape == (B, num_samples, D)
    assert log_p.shape == (B, num_samples)
    assert jnp.allclose(z, z_ref, atol=1e-5, rtol=1e-5)
    assert jnp.allclose(log_p, log_p_ref, atol=1e-4, rtol=1e-5)

    print("KERNEL_OK")
</pallas_src>

<mosaic_0001>
module attributes {stable_mosaic.version = 11 : i64} {
  func.func @_base_encoder_kernel(%arg0: i32, %arg1: memref<1xf32, #tpu.memory_space<smem>>, %arg2: memref<8x128xf32, #tpu.memory_space<vmem>>, %arg3: memref<1x128xf32, #tpu.memory_space<vmem>>, %arg4: memref<1x128xf32, #tpu.memory_space<vmem>>, %arg5: memref<8x128xf32, #tpu.memory_space<vmem>>, %arg6: memref<8x4xf32, #tpu.memory_space<vmem>>) attributes {dimension_semantics = [#tpu.dimension_semantics<parallel>], iteration_bounds = array<i64: 1>, scalar_prefetch = 0 : i64, scratch_operands = 0 : i64, tpu.core_type = #tpu.core_type<tc>, window_params = [{transform_indices = @transform_0, window_bounds = array<i64: 1>}, {transform_indices = @transform_1, window_bounds = array<i64: 8, 128>}, {pipeline_mode = #tpu.pipeline_mode<synchronous>, transform_indices = @transform_2, window_bounds = array<i64: 1, 128>}, {pipeline_mode = #tpu.pipeline_mode<synchronous>, transform_indices = @transform_3, window_bounds = array<i64: 1, 128>}, {transform_indices = @transform_4, window_bounds = array<i64: 8, 128>}, {transform_indices = @transform_5, window_bounds = array<i64: 8, 4>}]} {
    %c0 = arith.constant 0 : index
    %c0_0 = arith.constant 0 : index
    %0 = vector.load %arg2[%c0, %c0_0] : memref<8x128xf32, #tpu.memory_space<vmem>>, vector<8x128xf32>
    %c0_1 = arith.constant 0 : index
    %c0_2 = arith.constant 0 : index
    %1 = vector.load %arg3[%c0_1, %c0_2] : memref<1x128xf32, #tpu.memory_space<vmem>>, vector<1x128xf32>
    %c0_3 = arith.constant 0 : index
    %c0_4 = arith.constant 0 : index
    %2 = vector.load %arg4[%c0_3, %c0_4] : memref<1x128xf32, #tpu.memory_space<vmem>>, vector<1x128xf32>
    %3 = vector.broadcast %2 : vector<1x128xf32> to vector<8x128xf32>
    %4 = arith.mulf %3, %0 : vector<8x128xf32>
    %5 = vector.broadcast %1 : vector<1x128xf32> to vector<8x128xf32>
    %6 = arith.addf %5, %4 : vector<8x128xf32>
    %c0_5 = arith.constant 0 : index
    %c0_6 = arith.constant 0 : index
    %7 = vector.load %arg5[%c0_5, %c0_6] : memref<8x128xf32, #tpu.memory_space<vmem>>, vector<8x128xf32>
    tpu.vector_store %arg5[%c0_5, %c0_6], %6 {strides = array<i32>} : memref<8x128xf32, #tpu.memory_space<vmem>>, vector<8x128xf32>,
    %8 = arith.mulf %0, %0 : vector<8x128xf32>
    %9 = tpu.iota {dimensions = array<i32: 1>} : vector<8x4xi32>
    %cst = arith.constant 0.000000e+00 : f32
    %10 = vector.broadcast %cst : f32 to vector<8x4xf32>
    %11 = vector.extract_strided_slice %8 {offsets = [0, 0], sizes = [8, 32], strides = [1, 1]} : vector<8x128xf32> to vector<8x32xf32>
    %cst_7 = arith.constant dense<0.000000e+00> : vector<8xf32>
    %12 = vector.multi_reduction <add>, %11, %cst_7 [1] : vector<8x32xf32> to vector<8xf32>
    %13 = vector.shape_cast %12 : vector<8xf32> to vector<8x1xf32>
    %c0_i32 = arith.constant 0 : i32
    %14 = vector.broadcast %c0_i32 : i32 to vector<8x4xi32>
    %15 = arith.cmpi eq, %9, %14 : vector<8x4xi32>
    %cst_8 = arith.constant 0.000000e+00 : f32
    %16 = vector.shape_cast %13 : vector<8x1xf32> to vector<8x1xf32>
    %17 = vector.broadcast %16 : vector<8x1xf32> to vector<8x4xf32>
    %18 = vector.broadcast %cst_8 : f32 to vector<8x4xf32>
    %19 = arith.select %15, %17, %18 : vector<8x4xi1>, vector<8x4xf32>
    %20 = arith.addf %10, %19 : vector<8x4xf32>
    %21 = vector.extract_strided_slice %8 {offsets = [0, 32], sizes = [8, 32], strides = [1, 1]} : vector<8x128xf32> to vector<8x32xf32>
    %cst_9 = arith.constant dense<0.000000e+00> : vector<8xf32>
    %22 = vector.multi_reduction <add>, %21, %cst_9 [1] : vector<8x32xf32> to vector<8xf32>
    %23 = vector.shape_cast %22 : vector<8xf32> to vector<8x1xf32>
    %c1_i32 = arith.constant 1 : i32
    %24 = vector.broadcast %c1_i32 : i32 to vector<8x4xi32>
    %25 = arith.cmpi eq, %9, %24 : vector<8x4xi32>
    %cst_10 = arith.constant 0.000000e+00 : f32
    %26 = vector.shape_cast %23 : vector<8x1xf32> to vector<8x1xf32>
    %27 = vector.broadcast %26 : vector<8x1xf32> to vector<8x4xf32>
    %28 = vector.broadcast %cst_10 : f32 to vector<8x4xf32>
    %29 = arith.select %25, %27, %28 : vector<8x4xi1>, vector<8x4xf32>
    %30 = arith.addf %20, %29 : vector<8x4xf32>
    %31 = vector.extract_strided_slice %8 {offsets = [0, 64], sizes = [8, 32], strides = [1, 1]} : vector<8x128xf32> to vector<8x32xf32>
    %cst_11 = arith.constant dense<0.000000e+00> : vector<8xf32>
    %32 = vector.multi_reduction <add>, %31, %cst_11 [1] : vector<8x32xf32> to vector<8xf32>
    %33 = vector.shape_cast %32 : vector<8xf32> to vector<8x1xf32>
    %c2_i32 = arith.constant 2 : i32
    %34 = vector.broadcast %c2_i32 : i32 to vector<8x4xi32>
    %35 = arith.cmpi eq, %9, %34 : vector<8x4xi32>
    %cst_12 = arith.constant 0.000000e+00 : f32
    %36 = vector.shape_cast %33 : vector<8x1xf32> to vector<8x1xf32>
    %37 = vector.broadcast %36 : vector<8x1xf32> to vector<8x4xf32>
    %38 = vector.broadcast %cst_12 : f32 to vector<8x4xf32>
    %39 = arith.select %35, %37, %38 : vector<8x4xi1>, vector<8x4xf32>
    %40 = arith.addf %30, %39 : vector<8x4xf32>
    %41 = vector.extract_strided_slice %8 {offsets = [0, 96], sizes = [8, 32], strides = [1, 1]} : vector<8x128xf32> to vector<8x32xf32>
    %cst_13 = arith.constant dense<0.000000e+00> : vector<8xf32>
    %42 = vector.multi_reduction <add>, %41, %cst_13 [1] : vector<8x32xf32> to vector<8xf32>
    %43 = vector.shape_cast %42 : vector<8xf32> to vector<8x1xf32>
    %c3_i32 = arith.constant 3 : i32
    %44 = vector.broadcast %c3_i32 : i32 to vector<8x4xi32>
    %45 = arith.cmpi eq, %9, %44 : vector<8x4xi32>
    %cst_14 = arith.constant 0.000000e+00 : f32
    %46 = vector.shape_cast %43 : vector<8x1xf32> to vector<8x1xf32>
    %47 = vector.broadcast %46 : vector<8x1xf32> to vector<8x4xf32>
    %48 = vector.broadcast %cst_14 : f32 to vector<8x4xf32>
    %49 = arith.select %45, %47, %48 : vector<8x4xi1>, vector<8x4xf32>
    %50 = arith.addf %40, %49 : vector<8x4xf32>
    %c0_15 = arith.constant 0 : index
    %51 = memref.load %arg1[%c0_15] : memref<1xf32, #tpu.memory_space<smem>>
    %cst_16 = arith.constant 5.000000e-01 : f32
    %52 = vector.broadcast %cst_16 : f32 to vector<8x4xf32>
    %53 = arith.mulf %52, %50 : vector<8x4xf32>
    %54 = vector.broadcast %51 : f32 to vector<8x4xf32>
    %55 = arith.subf %54, %53 : vector<8x4xf32>
    %c0_17 = arith.constant 0 : index
    %c0_18 = arith.constant 0 : index
    %56 = vector.load %arg6[%c0_17, %c0_18] : memref<8x4xf32, #tpu.memory_space<vmem>>, vector<8x4xf32>
    tpu.vector_store %arg6[%c0_17, %c0_18], %55 {strides = array<i32>} : memref<8x4xf32, #tpu.memory_space<vmem>>, vector<8x4xf32>,
    return
  }
  func.func @transform_0(%arg0: i32) -> i32 {
    %c0_i32 = arith.constant 0 : i32
    %c0_i32_0 = arith.constant 0 : i32
    return %c0_i32 : i32
  }
  func.func @transform_1(%arg0: i32) -> (i32, i32) {
    %c0_i32 = arith.constant 0 : i32
    %c0_i32_0 = arith.constant 0 : i32
    return %arg0, %c0_i32 : i32, i32
  }
  func.func @transform_2(%arg0: i32) -> (i32, i32) {
    %c0_i32 = arith.constant 0 : i32
    %c0_i32_0 = arith.constant 0 : i32
    %c0_i32_1 = arith.constant 0 : i32
    return %c0_i32, %c0_i32_0 : i32, i32
  }
  func.func @transform_3(%arg0: i32) -> (i32, i32) {
    %c0_i32 = arith.constant 0 : i32
    %c0_i32_0 = arith.constant 0 : i32
    %c0_i32_1 = arith.constant 0 : i32
    return %c0_i32, %c0_i32_0 : i32, i32
  }
  func.func @transform_4(%arg0: i32) -> (i32, i32) {
    %c0_i32 = arith.constant 0 : i32
    %c0_i32_0 = arith.constant 0 : i32
    return %arg0, %c0_i32 : i32, i32
  }
  func.func @transform_5(%arg0: i32) -> (i32, i32) {
    %c0_i32 = arith.constant 0 : i32
    %c0_i32_0 = arith.constant 0 : i32
    return %arg0, %c0_i32 : i32, i32
  }
}

</mosaic_0001>

<llo_original>
// kernel: tpu_custom_call.1
$region0: #{tpu_custom_call.1}
  #allocation0 [shape = 'u32[]', space=smem, size = 0x4, offset = 0x4, fixed_abs, tag = 'smem constant byte address 0x4 - core index']
  #allocation1 [shape = 'u32[144,128]{1,0:T(1,128)}', space=vmem, size = 0x12000, scoped, tag = 'internal scratch']
  #allocation2 [shape = 'f32[1]{0:T(128)S(6)}', space=smem, size = 0x200, scoped, tag = 'scoped memory for tpu_custom_call.1']
  %s0 = inlined_call_operand.<no memory space> [shape: f32[1], index: 0, kind: input, shape index: {}]
  %s1 = inlined_call_operand.hbm [shape: f32[8,128], index: 1, kind: input, shape index: {}]
  %s2 = inlined_call_operand.vmem [shape: f32[1,128], index: 2, kind: input, shape index: {}]
  %s3 = inlined_call_operand.vmem [shape: f32[1,128], index: 3, kind: input, shape index: {}]
  %s4 = inlined_call_operand.hbm [shape: f32[8,128], index: 4, kind: output, shape index: {0}]
  %s5 = inlined_call_operand.vmem [shape: f32[8,4], index: 5, kind: output, shape index: {1}]
  %6 = xla_tuple %s4, %s5
  %s7 = sld [smem:[#allocation0]]
  $region38: #{tpu_custom_call.1} parent=0
    _
  %s9 = ssub.s32 1, %s7
  %s10 = scalar_select 0, %s9, %s7
  %11 = sst [smem:[#allocation2]] %s0
  $region1: #{tpu_custom_call.1} parent=0
    #allocation3 [shape = 'u8[4096]{0}', space=vmem, size = 0x1000, scoped, tag = 'input window, operand 1, single buffered']
    #allocation4 [shape = 's32[1]{0}', space=sflag, size = 0x4, scoped, tag = 'scoped memory for tpu_custom_call.1']
    #allocation5 [shape = 's32[1]{0}', space=sflag, size = 0x4, scoped, tag = 'scoped memory for tpu_custom_call.1']
    #allocation6 [shape = 'u8[4096]{0}', space=vmem, size = 0x1000, scoped, tag = 'output window, operand 0, single buffered']
    %12 = vsyncpa [#allocation4], 0
    %13 = vsyncpa [#allocation5], 0
    // Predicated region
    $region2: #{tpu_custom_call.1} parent=1 // pred_check
      _
    $region3: #{tpu_custom_call.1} parent=1 // pred_check_branch
      %15 = sbr.rel (0) target = $region5
    $region4: #{tpu_custom_call.1} parent=1 // pred_region
      _
    $region5: #{tpu_custom_call.1} parent=1 // pred_fallthru
      _
    // Predicated region
    $region6: #{tpu_custom_call.1} parent=1 // pred_check
      _
    $region7: #{tpu_custom_call.1} parent=1 // pred_check_branch
      %17 = sbr.rel (0) target = $region9
    $region8: #{tpu_custom_call.1} parent=1 // pred_region
      %s19 = ssub.s32 128, 128
      %20 = vsyncadd [#allocation4], %s19
      %s22 = sshll.u32 [#allocation3], 4
      %s23 = int_to_ptr.vmem [resolvable:$true] %s22
      %25 = dma.hbm_to_vmem [thread:$0]  %s1, 128, %s23, [#allocation4]
    $region9: #{tpu_custom_call.1} parent=1 // pred_fallthru
      _
    // Predicated region
    $region10: #{tpu_custom_call.1} parent=1 // pred_check
      _
    $region11: #{tpu_custom_call.1} parent=1 // pred_check_branch
      %27 = sbr.rel (0) target = $region13
    $region12: #{tpu_custom_call.1} parent=1 // pred_region
      _
    $region13: #{tpu_custom_call.1} parent=1 // pred_fallthru
      _
    // Predicated region
    $region14: #{tpu_custom_call.1} parent=1 // pred_check
      _
    $region15: #{tpu_custom_call.1} parent=1 // pred_check_branch
      %29 = sbr.rel (0) target = $region17
    $region16: #{tpu_custom_call.1} parent=1 // pred_region
      _
    $region17: #{tpu_custom_call.1} parent=1 // pred_fallthru
      _
    // Predicated region
    $region18: #{tpu_custom_call.1} parent=1 // pred_check
      _
    $region19: #{tpu_custom_call.1} parent=1 // pred_check_branch
      %31 = sbr.rel (0) target = $region21
    $region20: #{tpu_custom_call.1} parent=1 // pred_region
      %32 = dma.done [#allocation4], 128
    $region21: #{tpu_custom_call.1} parent=1 // pred_fallthru
      _
    %v33 = vld [vmem:[#allocation3] sm:$0xff]
    %v34 = vld [vmem:[%s2] sm:$0x1]
    %v35 = vld [vmem:[%s3] sm:$0x1]
    %v37 = vlaneseq
    %v38 = vshrl.u32 %v37, 7
    %v39 = vsub.s32 0, %v38
    %v40 = vrot.slane %v35, %v39
    %v42 = vmul.f32 %v40, %v33
    %v44 = vlaneseq
    %v45 = vshrl.u32 %v44, 7
    %v46 = vsub.s32 0, %v45
    %v47 = vrot.slane %v34, %v46
    %v49 = vadd.f32 %v47, %v42
    %50 = vst [vmem:[#allocation6] sm:$0xff] %v49
    %v51 = vmul.f32 %v33, %v33
    %v52 = vlaneseq
    %v53 = vand.u32 %v52, 127
    %vm54 = vcmask 261120
    %v55 = vsel %vm54, %v51, 0.0
    %56 = vadd.xlane.f32.xlu0 %v55
    %v57 = vpop.xlane.xlu0 %56
    %vm58 = vcmp.eq.s32.totalorder %v53, 0
    %v59 = vsel %vm58, %v57, 0.0
    %v60 = vadd.f32 %v59, 0.0
    %62 = vrot.lane.b32.xlu0 %v51, 96
    %v63 = vpop.permute.xlu0 %62
    %v65 = vsel %vm54, %v63, 0.0
    %66 = vadd.xlane.f32.xlu0 %v65
    %v67 = vpop.xlane.xlu0 %66
    %vm68 = vcmp.eq.s32.totalorder %v53, 1
    %v69 = vsel %vm68, %v67, 0.0
    %v70 = vadd.f32 %v60, %v69
    %71 = vrot.lane.b32.xlu0 %v51, 64
    %v72 = vpop.permute.xlu0 %71
    %v74 = vsel %vm54, %v72, 0.0
    %75 = vadd.xlane.f32.xlu0 %v74
    %v76 = vpop.xlane.xlu0 %75
    %vm77 = vcmp.eq.s32.totalorder %v53, 2
    %v78 = vsel %vm77, %v76, 0.0
    %v79 = vadd.f32 %v70, %v78
    %80 = vrot.lane.b32.xlu0 %v51, 32
    %v81 = vpop.permute.xlu0 %80
    %v83 = vsel %vm54, %v81, 0.0
    %84 = vadd.xlane.f32.xlu0 %v83
    %v85 = vpop.xlane.xlu0 %84
    %vm86 = vcmp.eq.s32.totalorder %v53, 3
    %v87 = vsel %vm86, %v85, 0.0
    %v88 = vadd.f32 %v79, %v87
    %s89 = sld [smem:[#allocation2]]
    %v90 = vmul.f32 %v88, 0.5
    %v91 = vstv %s89
    %v92 = vsub.f32 %v91, %v90
    %vm93 = vcmask 31744
    %94 = vst.msk [vmem:[%s5] sm:$0xff] %vm93, %v92
    // Predicated region
    $region22: #{tpu_custom_call.1} parent=1 // pred_check
      _
    $region23: #{tpu_custom_call.1} parent=1 // pred_check_branch
      %96 = sbr.rel (0) target = $region25
    $region24: #{tpu_custom_call.1} parent=1 // pred_region
      %s98 = ssub.s32 128, 128
      %99 = vsyncadd [#allocation5], %s98
      %s101 = sshll.u32 [#allocation6], 4
      %s102 = int_to_ptr.vmem [resolvable:$true] %s101
      %104 = dma.vmem_to_hbm [thread:$0]  %s102, 128, %s4, [#allocation5]
    $region25: #{tpu_custom_call.1} parent=1 // pred_fallthru
      _
    // Predicated region
    $region26: #{tpu_custom_call.1} parent=1 // pred_check
      _
    $region27: #{tpu_custom_call.1} parent=1 // pred_check_branch
      %106 = sbr.rel (0) target = $region29
    $region28: #{tpu_custom_call.1} parent=1 // pred_region
      _
    $region29: #{tpu_custom_call.1} parent=1 // pred_fallthru
      _
    // Predicated region
    $region30: #{tpu_custom_call.1} parent=1 // pred_check
      _
    $region31: #{tpu_custom_call.1} parent=1 // pred_check_branch
      %108 = sbr.rel (0) target = $region33
    $region32: #{tpu_custom_call.1} parent=1 // pred_region
      %109 = dma.done [#allocation5], 128
    $region33: #{tpu_custom_call.1} parent=1 // pred_fallthru
      _
    // Predicated region
    $region34: #{tpu_custom_call.1} parent=1 // pred_check
      _
    $region35: #{tpu_custom_call.1} parent=1 // pred_check_branch
      %111 = sbr.rel (0) target = $region37
    $region36: #{tpu_custom_call.1} parent=1 // pred_region
      _
    $region37: #{tpu_custom_call.1} parent=1 // pred_fallthru
      _
    %112 = vsyncpa [#allocation4], 1
    %113 = vsyncpa [#allocation5], 1

</llo_original>
